<compile_context>
chip_gen: v6e
topology: v6e:2x2x1
jax: 0.10.0
libtpu: 0.0.40
codegen_flags: <defaults>
</compile_context>

<pallas_src>
import functools

import numpy as np
import jax
import jax.numpy as jnp
from jax.experimental import pallas as pl
from jax.experimental.pallas import tpu as pltpu

# ---- TextCNN hyper-parameters (hard-coded in the PyTorch module) ------------
NUM_FILTERS = 3
FILTER_SIZES = (2, 2, 2)          # all windows of size 2 along the layer axis
HIDDEN_SIZE = 768                 # hard-coded in TextCNN.__init__
N_CLASS = 47                      # hard-coded in TextCNN.__init__
NUM_FILTER_TOTAL = NUM_FILTERS * len(FILTER_SIZES)   # 9

# Lane-aligned padded widths (real values occupy the leading columns).
NF_PAD = 128                      # padded filter count  (9  -> 128)
C_PAD = 128                       # padded class count   (47 -> 128)


# =============================== Pallas kernel ===============================
def textcnn_kernel(x_ref, cw_ref, cb_ref, lw_ref, lb_ref, out_ref, *, L, nf_pad):
    """Fused TextCNN hot path for one batch tile.

    x_ref : (TB*L, H)       bf16  CLS embeddings, batch-major then layer
    cw_ref: (H, 2*nf_pad)   bf16  [conv W at window offset 0 | offset 1] (zero padded)
    cb_ref: (1, nf_pad)     f32   conv biases (zero padded)
    lw_ref: (nf_pad, C_PAD) bf16  Linear(num_filter_total, n_class).weight.T (padded)
    lb_ref: (1, C_PAD)      f32   the extra `self.bias` parameter (padded)
    out_ref: (TB, C_PAD)    f32   padded logits
    """
    x = x_ref[...]                                               # (TB*L, H) bf16
    # Single MXU matmul covers BOTH window offsets for every (batch, layer) row.
    y = jnp.dot(x, cw_ref[...],
                preferred_element_type=jnp.float32)              # (TB*L, 2*nf_pad) f32
    tb = x.shape[0] // L
    y3 = y.reshape(tb, L, 2 * nf_pad)
    # conv(window=2) at time t = offset-0 term at t + offset-1 term at t+1.
    cb = jnp.reshape(cb_ref[...], (1, 1, nf_pad))
    h = y3[:, : L - 1, :nf_pad] + y3[:, 1:, nf_pad:] + cb        # (TB, L-1, nf_pad)
    h = jnp.maximum(h, 0.0)                                      # ReLU (f32, VPU)
    pooled = jnp.max(h, axis=1)                                  # max-pool over time
    out_ref[...] = (
        jnp.dot(pooled.astype(lw_ref.dtype), lw_ref[...],
                preferred_element_type=jnp.float32)
        + lb_ref[...])


def textcnn_pallas(cls_embeddings, conv_w, conv_b, lin_w, lin_b, *, batch_tile=None):
    """cls_embeddings: (B, L, H) f32  ->  logits (B, N_CLASS) f32."""
    B, L, H = cls_embeddings.shape
    assert L >= 2, "TextCNN window size 2 requires num_encode_layer >= 2"
    nf_pad = conv_b.shape[-1]
    c_pad = lin_w.shape[-1]
    if batch_tile is None:
        batch_tile = B if B <= 128 else 128
    assert B % batch_tile == 0 and (batch_tile == B or batch_tile % 8 == 0)

    # Lane-dense 2D input view; narrow matmul operands to bf16 (f32 accumulate).
    x2d = cls_embeddings.reshape(B * L, H).astype(jnp.bfloat16)
    cw = conv_w.astype(jnp.bfloat16)
    lw = lin_w.astype(jnp.bfloat16)

    kernel = functools.partial(textcnn_kernel, L=L, nf_pad=nf_pad)
    padded = pl.pallas_call(
        kernel,
        out_shape=jax.ShapeDtypeStruct((B, c_pad), jnp.float32),
        grid_spec=pltpu.PrefetchScalarGridSpec(
            num_scalar_prefetch=0,
            grid=(B // batch_tile,),
            in_specs=[
                pl.BlockSpec((batch_tile * L, H), lambda i: (i, 0)),
                pl.BlockSpec((H, 2 * nf_pad), lambda i: (0, 0)),
                pl.BlockSpec((1, nf_pad), lambda i: (0, 0)),
                pl.BlockSpec((nf_pad, c_pad), lambda i: (0, 0)),
                pl.BlockSpec((1, c_pad), lambda i: (0, 0)),
            ],
            out_specs=pl.BlockSpec((batch_tile, c_pad), lambda i: (i, 0)),
        ),
        compiler_params=pltpu.CompilerParams(
            dimension_semantics=("parallel",)),
    )(x2d, cw, conv_b, lw, lb := lin_b)
    return padded[:, :N_CLASS]


# ================= synthetic "pretrained BERT" stand-in (glue) ===============
# TODO(synk): `pretrained_model` is an external injected HuggingFace model; a
# deterministic synthetic transformer stand-in (plain JAX) produces
# `hidden_states` with the same structure (num_encode_layer + 1 tensors of
# shape [B, S, 768]).
def _layer_norm(x, eps=1e-12):
    mu = jnp.mean(x, axis=-1, keepdims=True)
    var = jnp.var(x, axis=-1, keepdims=True)
    return (x - mu) / jnp.sqrt(var + eps)


def synthetic_bert(params, input_ids, attention_mask):
    h = params["emb"][input_ids]                       # (B, S, H)
    hidden_states = [h]                                # hidden_states[0] = embeddings
    mask = (attention_mask > 0)[:, None, :]            # (B, 1, S)
    scale = 1.0 / jnp.sqrt(jnp.float32(h.shape[-1]))
    for lp in params["layers"]:
        q = h @ lp["wq"]
        k = h @ lp["wk"]
        v = h @ lp["wv"]
        scores = (q @ jnp.swapaxes(k, -1, -2)) * scale
        scores = jnp.where(mask, scores, -1e9)
        attn = jax.nn.softmax(scores, axis=-1)
        h = _layer_norm(h + (attn @ v) @ lp["wo"])
        ff = jax.nn.gelu(h @ lp["w1"] + lp["b1"]) @ lp["w2"] + lp["b2"]
        h = _layer_norm(h + ff)
        hidden_states.append(h)
    return hidden_states


# ============================ full forward (glue) ============================
def custom_bert_forward(bert_params, cnn_params, input_ids, attention_mask):
    hidden_states = synthetic_bert(bert_params, input_ids, attention_mask)
    # TODO(synk): the CLS gather/stack could be folded into the kernel pipeline
    # via an Element index_map over hidden_states to skip this HBM round-trip.
    cls = jnp.stack([hs[:, 0, :] for hs in hidden_states[1:]], axis=1)  # (B, L, H)
    logits = textcnn_pallas(cls, cnn_params["conv_w"], cnn_params["conv_b"],
                            cnn_params["lin_w"], cnn_params["lin_b"])
    return logits, cls


# ======================= pure-JAX reference (validation) =====================
def textcnn_reference(x, conv_w_banks, conv_b_banks, weight, bias_param):
    """Mirrors PyTorch TextCNN.forward exactly.  x: (B, L, H) f32."""
    HIGH = jax.lax.Precision.HIGHEST
    win = jnp.stack([x[:, :-1, :], x[:, 1:, :]], axis=2)      # (B, L-1, 2, H)
    pooled_outputs = []
    for w, b in zip(conv_w_banks, conv_b_banks):              # w: (3,1,2,H), b: (3,)
        h = jnp.einsum('btdj,fdj->btf', win, w[:, 0], precision=HIGH) + b[None, None, :]
        h = jnp.maximum(h, 0.0)                               # relu
        pooled_outputs.append(jnp.max(h, axis=1))             # maxpool over time -> (B, 3)
    h_pool_flat = jnp.concatenate(pooled_outputs, axis=-1)    # (B, 9), bank-major like torch.cat
    return jnp.einsum('bf,cf->bc', h_pool_flat, weight, precision=HIGH) + bias_param[None, :]


# =================================== main ====================================
if __name__ == "__main__":
    key = jax.random.PRNGKey(0)
    B, S = 2, 8
    num_encode_layer = 4          # number of synthetic encoder layers (= L)
    num_labels = 5                # used only by the (unused-in-forward) self.linear
    vocab = 64
    ffn = 128
    H = HIDDEN_SIZE

    ks = list(jax.random.split(key, 64))
    nxt = iter(ks).__next__

    # --- synthetic BERT params (deterministic) ---
    bert_params = {
        "emb": jax.random.normal(nxt(), (vocab, H), jnp.float32) * 0.02,
        "layers": [
            {
                "wq": jax.random.normal(nxt(), (H, H), jnp.float32) * 0.02,
                "wk": jax.random.normal(nxt(), (H, H), jnp.float32) * 0.02,
                "wv": jax.random.normal(nxt(), (H, H), jnp.float32) * 0.02,
                "wo": jax.random.normal(nxt(), (H, H), jnp.float32) * 0.02,
                "w1": jax.random.normal(nxt(), (H, ffn), jnp.float32) * 0.02,
                "b1": jnp.zeros((ffn,), jnp.float32),
                "w2": jax.random.normal(nxt(), (ffn, H), jnp.float32) * 0.02,
                "b2": jnp.zeros((H,), jnp.float32),
            }
            for _ in range(num_encode_layer)
        ],
    }

    # --- TextCNN params (deterministic), PyTorch layouts first ---
    conv_w_banks = [jax.random.normal(nxt(), (NUM_FILTERS, 1, 2, H), jnp.float32) * 0.05
                    for _ in FILTER_SIZES]                       # Conv2d weight (out,in,kh,kw)
    conv_b_banks = [jax.random.normal(nxt(), (NUM_FILTERS,), jnp.float32) * 0.05
                    for _ in FILTER_SIZES]                       # Conv2d bias
    weight = jax.random.normal(nxt(), (N_CLASS, NUM_FILTER_TOTAL), jnp.float32) * 0.1  # Linear, bias=False
    bias_param = jnp.ones((N_CLASS,), jnp.float32)               # self.bias = ones(47)

    # self.linear of CustomBERTModel: defined in __init__ but NEVER used in forward
    # (kept for fidelity, intentionally unused).
    _unused_linear_w = jax.random.normal(nxt(), (num_labels, NUM_FILTER_TOTAL), jnp.float32) * 0.1
    _unused_linear_b = jnp.zeros((num_labels,), jnp.float32)

    # Pack conv params for the fused kernel:
    #   conv_w: (H, 2*NF_PAD) = [offset-0 weights | offset-1 weights], zero padded;
    #   column (bank*3 + ch) in each half = torch_W[bank][ch, 0, dt, :]
    cw_dt = jnp.concatenate(
        [jnp.transpose(w[:, 0], (1, 2, 0)) for w in conv_w_banks], axis=-1)   # (2, H, 9)
    conv_w_packed = jnp.zeros((H, 2 * NF_PAD), jnp.float32)
    conv_w_packed = conv_w_packed.at[:, :NUM_FILTER_TOTAL].set(cw_dt[0])
    conv_w_packed = conv_w_packed.at[:, NF_PAD:NF_PAD + NUM_FILTER_TOTAL].set(cw_dt[1])
    conv_b_packed = jnp.zeros((1, NF_PAD), jnp.float32).at[
        0, :NUM_FILTER_TOTAL].set(jnp.concatenate(conv_b_banks))
    lin_w_packed = jnp.zeros((NF_PAD, C_PAD), jnp.float32).at[
        :NUM_FILTER_TOTAL, :N_CLASS].set(weight.T)
    lin_b_packed = jnp.zeros((1, C_PAD), jnp.float32).at[0, :N_CLASS].set(bias_param)

    cnn_params = {"conv_w": conv_w_packed, "conv_b": conv_b_packed,
                  "lin_w": lin_w_packed, "lin_b": lin_b_packed}

    # --- inputs ---
    input_ids = jax.random.randint(nxt(), (B, S), 0, vocab, dtype=jnp.int32)
    attention_mask = jnp.concatenate(
        [jnp.ones((B, S - 2), jnp.int32), jnp.zeros((B, 2), jnp.int32)], axis=-1)

    # --- run ---
    logits, cls = custom_bert_forward(bert_params, cnn_params, input_ids, attention_mask)
    logits = jax.block_until_ready(logits)

    # --- validate the Pallas TextCNN against a faithful pure-JAX reference ---
    # (kernel uses bf16 MXU operands with f32 accumulation; reference is
    #  Precision.HIGHEST f32, hence the 2e-2 tolerance — a deliberate choice.)
    ref = jax.block_until_ready(
        textcnn_reference(cls, conv_w_banks, conv_b_banks, weight, bias_param))
    assert logits.shape == (B, N_CLASS)
    np.testing.assert_allclose(np.asarray(logits), np.asarray(ref), rtol=2e-2, atol=2e-2)

    print("KERNEL_OK")
</pallas_src>

<mosaic_0001>
module attributes {stable_mosaic.version = 11 : i64} {
  func.func @textcnn_kernel(%arg0: i32, %arg1: memref<8x768xbf16, #tpu.memory_space<vmem>>, %arg2: memref<768x256xbf16, #tpu.memory_space<vmem>>, %arg3: memref<1x128xf32, #tpu.memory_space<vmem>>, %arg4: memref<128x128xbf16, #tpu.memory_space<vmem>>, %arg5: memref<1x128xf32, #tpu.memory_space<vmem>>, %arg6: memref<2x128xf32, #tpu.memory_space<vmem>>) attributes {dimension_semantics = [#tpu.dimension_semantics<parallel>], iteration_bounds = array<i64: 1>, scalar_prefetch = 0 : i64, scratch_operands = 0 : i64, tpu.core_type = #tpu.core_type<tc>, window_params = [{transform_indices = @transform_0, window_bounds = array<i64: 8, 768>}, {pipeline_mode = #tpu.pipeline_mode<synchronous>, transform_indices = @transform_1, window_bounds = array<i64: 768, 256>}, {pipeline_mode = #tpu.pipeline_mode<synchronous>, transform_indices = @transform_2, window_bounds = array<i64: 1, 128>}, {pipeline_mode = #tpu.pipeline_mode<synchronous>, transform_indices = @transform_3, window_bounds = array<i64: 128, 128>}, {pipeline_mode = #tpu.pipeline_mode<synchronous>, transform_indices = @transform_4, window_bounds = array<i64: 1, 128>}, {transform_indices = @transform_5, window_bounds = array<i64: 2, 128>}]} {
    %c0 = arith.constant 0 : index
    %c0_0 = arith.constant 0 : index
    %0 = vector.load %arg1[%c0, %c0_0] : memref<8x768xbf16, #tpu.memory_space<vmem>>, vector<8x768xbf16>
    %c0_1 = arith.constant 0 : index
    %c0_2 = arith.constant 0 : index
    %1 = vector.load %arg2[%c0_1, %c0_2] : memref<768x256xbf16, #tpu.memory_space<vmem>>, vector<768x256xbf16>
    %cst = arith.constant dense<0.000000e+00> : vector<8x256xf32>
    %2 = tpu.matmul %0, %1, %cst {dimension_numbers = #tpu.dot_dimension_numbers<[1], [0], [0], [1], [0, 0, 1, 1], [], []>} : vector<8x768xbf16>, vector<768x256xbf16>, vector<8x256xf32> -> vector<8x256xf32>
    %3 = vector.shape_cast %2 : vector<8x256xf32> to vector<2x4x256xf32>
    %c0_3 = arith.constant 0 : index
    %c0_4 = arith.constant 0 : index
    %4 = vector.load %arg3[%c0_3, %c0_4] : memref<1x128xf32, #tpu.memory_space<vmem>>, vector<1x128xf32>
    %5 = vector.shape_cast %4 : vector<1x128xf32> to vector<1x1x128xf32>
    %6 = vector.extract_strided_slice %3 {offsets = [0, 0, 0], sizes = [2, 3, 128], strides = [1, 1, 1]} : vector<2x4x256xf32> to vector<2x3x128xf32>
    %7 = vector.extract_strided_slice %3 {offsets = [0, 1, 128], sizes = [2, 3, 128], strides = [1, 1, 1]} : vector<2x4x256xf32> to vector<2x3x128xf32>
    %8 = arith.addf %6, %7 : vector<2x3x128xf32>
    %9 = vector.broadcast %5 : vector<1x1x128xf32> to vector<2x3x128xf32>
    %10 = arith.addf %8, %9 : vector<2x3x128xf32>
    %cst_5 = arith.constant 0.000000e+00 : f32
    %11 = vector.broadcast %cst_5 : f32 to vector<2x3x128xf32>
    %12 = arith.maximumf %10, %11 : vector<2x3x128xf32>
    %cst_6 = arith.constant dense<0xFF800000> : vector<2x128xf32>
    %13 = vector.multi_reduction <maximumf>, %12, %cst_6 [1] : vector<2x3x128xf32> to vector<2x128xf32>
    %14 = arith.truncf %13 : vector<2x128xf32> to vector<2x128xbf16>
    %c0_7 = arith.constant 0 : index
    %c0_8 = arith.constant 0 : index
    %15 = vector.load %arg4[%c0_7, %c0_8] : memref<128x128xbf16, #tpu.memory_space<vmem>>, vector<128x128xbf16>
    %cst_9 = arith.constant dense<0.000000e+00> : vector<2x128xf32>
    %16 = tpu.matmul %14, %15, %cst_9 {dimension_numbers = #tpu.dot_dimension_numbers<[1], [0], [0], [1], [0, 0, 1, 1], [], []>} : vector<2x128xbf16>, vector<128x128xbf16>, vector<2x128xf32> -> vector<2x128xf32>
    %c0_10 = arith.constant 0 : index
    %c0_11 = arith.constant 0 : index
    %17 = vector.load %arg5[%c0_10, %c0_11] : memref<1x128xf32, #tpu.memory_space<vmem>>, vector<1x128xf32>
    %18 = vector.broadcast %17 : vector<1x128xf32> to vector<2x128xf32>
    %19 = arith.addf %16, %18 : vector<2x128xf32>
    %c0_12 = arith.constant 0 : index
    %c0_13 = arith.constant 0 : index
    %20 = vector.load %arg6[%c0_12, %c0_13] : memref<2x128xf32, #tpu.memory_space<vmem>>, vector<2x128xf32>
    tpu.vector_store %arg6[%c0_12, %c0_13], %19 {strides = array<i32>} : memref<2x128xf32, #tpu.memory_space<vmem>>, vector<2x128xf32>,
    return
  }
  func.func @transform_0(%arg0: i32) -> (i32, i32) {
    %c0_i32 = arith.constant 0 : i32
    %c0_i32_0 = arith.constant 0 : i32
    return %arg0, %c0_i32 : i32, i32
  }
  func.func @transform_1(%arg0: i32) -> (i32, i32) {
    %c0_i32 = arith.constant 0 : i32
    %c0_i32_0 = arith.constant 0 : i32
    %c0_i32_1 = arith.constant 0 : i32
    return %c0_i32, %c0_i32_0 : i32, i32
  }
  func.func @transform_2(%arg0: i32) -> (i32, i32) {
    %c0_i32 = arith.constant 0 : i32
    %c0_i32_0 = arith.constant 0 : i32
    %c0_i32_1 = arith.constant 0 : i32
    return %c0_i32, %c0_i32_0 : i32, i32
  }
  func.func @transform_3(%arg0: i32) -> (i32, i32) {
    %c0_i32 = arith.constant 0 : i32
    %c0_i32_0 = arith.constant 0 : i32
    %c0_i32_1 = arith.constant 0 : i32
    return %c0_i32, %c0_i32_0 : i32, i32
  }
  func.func @transform_4(%arg0: i32) -> (i32, i32) {
    %c0_i32 = arith.constant 0 : i32
    %c0_i32_0 = arith.constant 0 : i32
    %c0_i32_1 = arith.constant 0 : i32
    return %c0_i32, %c0_i32_0 : i32, i32
  }
  func.func @transform_5(%arg0: i32) -> (i32, i32) {
    %c0_i32 = arith.constant 0 : i32
    %c0_i32_0 = arith.constant 0 : i32
    return %arg0, %c0_i32 : i32, i32
  }
}

</mosaic_0001>

<llo_original>
// kernel: tpu_custom_call.1
$region0: #{tpu_custom_call.1}
  #allocation0 [shape = 'u32[]', space=smem, size = 0x4, offset = 0x4, fixed_abs, tag = 'smem constant byte address 0x4 - core index']
  #allocation1 [shape = 'u32[144,128]{1,0:T(1,128)}', space=vmem, size = 0x12000, scoped, tag = 'internal scratch']
  %s0 = inlined_call_operand.hbm [shape: bf16[8,768], index: 0, kind: input, shape index: {}]
  %s1 = inlined_call_operand.hbm [shape: bf16[768,256], index: 1, kind: input, shape index: {}]
  %s2 = inlined_call_operand.vmem [shape: f32[1,128], index: 2, kind: input, shape index: {}]
  %s3 = inlined_call_operand.hbm [shape: bf16[128,128], index: 3, kind: input, shape index: {}]
  %s4 = inlined_call_operand.vmem [shape: f32[1,128], index: 4, kind: input, shape index: {}]
  %s5 = inlined_call_operand.hbm [shape: f32[2,128], index: 5, kind: output, shape index: {}]
  %s6 = sld [smem:[#allocation0]]
  $region42: #{tpu_custom_call.1} parent=0
    _
  %s8 = ssub.s32 1, %s6
  %s9 = scalar_select 0, %s8, %s6
  $region1: #{tpu_custom_call.1} parent=0
    #allocation2 [shape = 'u8[12288]{0}', space=vmem, size = 0x3000, scoped, tag = 'input window, operand 0, single buffered']
    #allocation3 [shape = 's32[1]{0}', space=sflag, size = 0x4, scoped, tag = 'scoped memory for tpu_custom_call.1']
    #allocation4 [shape = 's32[1]{0}', space=sflag, size = 0x4, scoped, tag = 'scoped memory for tpu_custom_call.1']
    #allocation5 [shape = 'u8[393216]{0}', space=vmem, size = 0x60000, scoped, tag = 'input window, operand 1, single buffered']
    #allocation6 [shape = 's32[1]{0}', space=sflag, size = 0x4, scoped, tag = 'scoped memory for tpu_custom_call.1']
    #allocation7 [shape = 'u8[32768]{0}', space=vmem, size = 0x8000, scoped, tag = 'input window, operand 3, single buffered']
    #allocation8 [shape = 'u8[1024]{0}', space=vmem, size = 0x400, scoped, tag = 'output window, operand 0, single buffered']
    %10 = vsyncpa [#allocation3], 0
    %11 = vsyncpa [#allocation6], 0
    %12 = vsyncpa [#allocation4], 0
    // Predicated region
    $region2: #{tpu_custom_call.1} parent=1 // pred_check
      _
    $region3: #{tpu_custom_call.1} parent=1 // pred_check_branch
      %14 = sbr.rel (0) target = $region5
    $region4: #{tpu_custom_call.1} parent=1 // pred_region
      %s16 = ssub.s32 384, 384
      %17 = vsyncadd [#allocation3], %s16
      %s19 = sshll.u32 [#allocation2], 4
      %s20 = int_to_ptr.vmem [resolvable:$true] %s19
      %22 = dma.hbm_to_vmem [thread:$0]  %s0, 384, %s20, [#allocation3]
    $region5: #{tpu_custom_call.1} parent=1 // pred_fallthru
      _
    // Predicated region
    $region6: #{tpu_custom_call.1} parent=1 // pred_check
      _
    $region7: #{tpu_custom_call.1} parent=1 // pred_check_branch
      %24 = sbr.rel (0) target = $region9
    $region8: #{tpu_custom_call.1} parent=1 // pred_region
      %s26 = ssub.s32 12288, 12288
      %27 = vsyncadd [#allocation6], %s26
      %s28 = sshll.u32 [#allocation5], 4
      %s29 = int_to_ptr.vmem [resolvable:$true] %s28
      %34 = dma.hbm_to_vmem [thread:$0]  %s1, 12288, %s29, [#allocation6], 128, 128, 8
    $region9: #{tpu_custom_call.1} parent=1 // pred_fallthru
      _
    // Predicated region
    $region10: #{tpu_custom_call.1} parent=1 // pred_check
      _
    $region11: #{tpu_custom_call.1} parent=1 // pred_check_branch
      %36 = sbr.rel (0) target = $region13
    $region12: #{tpu_custom_call.1} parent=1 // pred_region
      _
    $region13: #{tpu_custom_call.1} parent=1 // pred_fallthru
      _
    // Predicated region
    $region14: #{tpu_custom_call.1} parent=1 // pred_check
      _
    $region15: #{tpu_custom_call.1} parent=1 // pred_check_branch
      %38 = sbr.rel (0) target = $region17
    $region16: #{tpu_custom_call.1} parent=1 // pred_region
      %s40 = ssub.s32 1024, 1024
      %41 = vsyncadd [#allocation6], %s40
      %s42 = sshll.u32 [#allocation7], 4
      %s43 = int_to_ptr.vmem [resolvable:$true] %s42
      %48 = dma.hbm_to_vmem [thread:$0]  %s3, 1024, %s43, [#allocation6], 64, 64, 4
    $region17: #{tpu_custom_call.1} parent=1 // pred_fallthru
      _
    // Predicated region
    $region18: #{tpu_custom_call.1} parent=1 // pred_check
      _
    $region19: #{tpu_custom_call.1} parent=1 // pred_check_branch
      %50 = sbr.rel (0) target = $region21
    $region20: #{tpu_custom_call.1} parent=1 // pred_region
      _
    $region21: #{tpu_custom_call.1} parent=1 // pred_fallthru
      _
    // Predicated region
    $region22: #{tpu_custom_call.1} parent=1 // pred_check
      _
    $region23: #{tpu_custom_call.1} parent=1 // pred_check_branch
      %52 = sbr.rel (0) target = $region25
    $region24: #{tpu_custom_call.1} parent=1 // pred_region
      %53 = dma.done [#allocation3], 384
    $region25: #{tpu_custom_call.1} parent=1 // pred_fallthru
      _
    // Predicated region
    $region26: #{tpu_custom_call.1} parent=1 // pred_check
      _
    $region27: #{tpu_custom_call.1} parent=1 // pred_check_branch
      %55 = sbr.rel (0) target = $region29
    $region28: #{tpu_custom_call.1} parent=1 // pred_region
      %56 = dma.done [#allocation6], 12288
    $region29: #{tpu_custom_call.1} parent=1 // pred_fallthru
      _
    // Predicated region
    $region30: #{tpu_custom_call.1} parent=1 // pred_check
      _
    $region31: #{tpu_custom_call.1} parent=1 // pred_check_branch
      %58 = sbr.rel (0) target = $region33
    $region32: #{tpu_custom_call.1} parent=1 // pred_region
      %59 = dma.done [#allocation6], 1024
    $region33: #{tpu_custom_call.1} parent=1 // pred_fallthru
      _
    %v61 = vld [vmem:[#allocation2] sm:$0xff]
    %v62 = vld [vmem:[#allocation2 + $0x8] sm:$0xff]
    %v63 = vld [vmem:[#allocation2 + $0x10] sm:$0xff]
    %v64 = vld [vmem:[#allocation5] sm:$0xff]
    %v65 = vld [vmem:[#allocation5 + $0x8] sm:$0xff]
    %v66 = vld [vmem:[#allocation5 + $0x10] sm:$0xff]
    %v67 = vld [vmem:[#allocation5 + $0x18] sm:$0xff]
    %v68 = vld [vmem:[#allocation5 + $0x20] sm:$0xff]
    %v69 = vld [vmem:[#allocation5 + $0x28] sm:$0xff]
    %v70 = vld [vmem:[#allocation5 + $0x30] sm:$0xff]
    %v71 = vld [vmem:[#allocation5 + $0x38] sm:$0xff]
    %v72 = vld [vmem:[#allocation5 + $0x40] sm:$0xff]
    %v73 = vld [vmem:[#allocation5 + $0x48] sm:$0xff]
    %v74 = vld [vmem:[#allocation5 + $0x50] sm:$0xff]
    %v75 = vld [vmem:[#allocation5 + $0x58] sm:$0xff]
    %v76 = vld [vmem:[#allocation5 + $0x60] sm:$0xff]
    %v77 = vld [vmem:[#allocation5 + $0x68] sm:$0xff]
    %v78 = vld [vmem:[#allocation5 + $0x70] sm:$0xff]
    %v79 = vld [vmem:[#allocation5 + $0x78] sm:$0xff]
    %v80 = vld [vmem:[#allocation5 + $0x80] sm:$0xff]
    %v81 = vld [vmem:[#allocation5 + $0x88] sm:$0xff]
    %v82 = vld [vmem:[#allocation5 + $0x90] sm:$0xff]
    %v83 = vld [vmem:[#allocation5 + $0x98] sm:$0xff]
    %v84 = vld [vmem:[#allocation5 + $0xa0] sm:$0xff]
    %v85 = vld [vmem:[#allocation5 + $0xa8] sm:$0xff]
    %v86 = vld [vmem:[#allocation5 + $0xb0] sm:$0xff]
    %v87 = vld [vmem:[#allocation5 + $0xb8] sm:$0xff]
    %v88 = vld [vmem:[#allocation5 + $0xc0] sm:$0xff]
    %v89 = vld [vmem:[#allocation5 + $0xc8] sm:$0xff]
    %v90 = vld [vmem:[#allocation5 + $0xd0] sm:$0xff]
    %v91 = vld [vmem:[#allocation5 + $0xd8] sm:$0xff]
    %v92 = vld [vmem:[#allocation5 + $0xe0] sm:$0xff]
    %v93 = vld [vmem:[#allocation5 + $0xe8] sm:$0xff]
    %v94 = vld [vmem:[#allocation5 + $0xf0] sm:$0xff]
    %v95 = vld [vmem:[#allocation5 + $0xf8] sm:$0xff]
    %v96 = vld [vmem:[#allocation5 + $0x100] sm:$0xff]
    %v97 = vld [vmem:[#allocation5 + $0x108] sm:$0xff]
    %v98 = vld [vmem:[#allocation5 + $0x110] sm:$0xff]
    %v99 = vld [vmem:[#allocation5 + $0x118] sm:$0xff]
    %v100 = vld [vmem:[#allocation5 + $0x120] sm:$0xff]
    %v101 = vld [vmem:[#allocation5 + $0x128] sm:$0xff]
    %v102 = vld [vmem:[#allocation5 + $0x130] sm:$0xff]
    %v103 = vld [vmem:[#allocation5 + $0x138] sm:$0xff]
    %v104 = vld [vmem:[#allocation5 + $0x140] sm:$0xff]
    %v105 = vld [vmem:[#allocation5 + $0x148] sm:$0xff]
    %v106 = vld [vmem:[#allocation5 + $0x150] sm:$0xff]
    %v107 = vld [vmem:[#allocation5 + $0x158] sm:$0xff]
    %v108 = vld [vmem:[#allocation5 + $0x160] sm:$0xff]
    %v109 = vld [vmem:[#allocation5 + $0x168] sm:$0xff]
    %v110 = vld [vmem:[#allocation5 + $0x170] sm:$0xff]
    %v111 = vld [vmem:[#allocation5 + $0x178] sm:$0xff]
    %v112 = vld [vmem:[#allocation5 + $0x180] sm:$0xff]
    %v113 = vld [vmem:[#allocation5 + $0x188] sm:$0xff]
    %v114 = vld [vmem:[#allocation5 + $0x190] sm:$0xff]
    %v115 = vld [vmem:[#allocation5 + $0x198] sm:$0xff]
    %v116 = vld [vmem:[#allocation5 + $0x1a0] sm:$0xff]
    %v117 = vld [vmem:[#allocation5 + $0x1a8] sm:$0xff]
    %v118 = vld [vmem:[#allocation5 + $0x1b0] sm:$0xff]
    %v119 = vld [vmem:[#allocation5 + $0x1b8] sm:$0xff]
    %v120 = vld [vmem:[#allocation5 + $0x1c0] sm:$0xff]
    %v121 = vld [vmem:[#allocation5 + $0x1c8] sm:$0xff]
    %v122 = vld [vmem:[#allocation5 + $0x1d0] sm:$0xff]
    %v123 = vld [vmem:[#allocation5 + $0x1d8] sm:$0xff]
    %v124 = vld [vmem:[#allocation5 + $0x1e0] sm:$0xff]
    %v125 = vld [vmem:[#allocation5 + $0x1e8] sm:$0xff]
    %v126 = vld [vmem:[#allocation5 + $0x1f0] sm:$0xff]
    %v127 = vld [vmem:[#allocation5 + $0x1f8] sm:$0xff]
    %v128 = vld [vmem:[#allocation5 + $0x200] sm:$0xff]
    %v129 = vld [vmem:[#allocation5 + $0x208] sm:$0xff]
    %v130 = vld [vmem:[#allocation5 + $0x210] sm:$0xff]
    %v131 = vld [vmem:[#allocation5 + $0x218] sm:$0xff]
    %v132 = vld [vmem:[#allocation5 + $0x220] sm:$0xff]
    %v133 = vld [vmem:[#allocation5 + $0x228] sm:$0xff]
    %v134 = vld [vmem:[#allocation5 + $0x230] sm:$0xff]
    %v135 = vld [vmem:[#allocation5 + $0x238] sm:$0xff]
    %v136 = vld [vmem:[#allocation5 + $0x240] sm:$0xff]
    %v137 = vld [vmem:[#allocation5 + $0x248] sm:$0xff]
    %v138 = vld [vmem:[#allocation5 + $0x250] sm:$0xff]
    %v139 = vld [vmem:[#allocation5 + $0x258] sm:$0xff]
    %v140 = vld [vmem:[#allocation5 + $0x260] sm:$0xff]
    %v141 = vld [vmem:[#allocation5 + $0x268] sm:$0xff]
    %v142 = vld [vmem:[#allocation5 + $0x270] sm:$0xff]
    %v143 = vld [vmem:[#allocation5 + $0x278] sm:$0xff]
    %v144 = vld [vmem:[#allocation5 + $0x280] sm:$0xff]
    %v145 = vld [vmem:[#allocation5 + $0x288] sm:$0xff]
    %v146 = vld [vmem:[#allocation5 + $0x290] sm:$0xff]
    %v147 = vld [vmem:[#allocation5 + $0x298] sm:$0xff]
    %v148 = vld [vmem:[#allocation5 + $0x2a0] sm:$0xff]
    %v149 = vld [vmem:[#allocation5 + $0x2a8] sm:$0xff]
    %v150 = vld [vmem:[#allocation5 + $0x2b0] sm:$0xff]
    %v151 = vld [vmem:[#allocation5 + $0x2b8] sm:$0xff]
    %v152 = vld [vmem:[#allocation5 + $0x2c0] sm:$0xff]
    %v153 = vld [vmem:[#allocation5 + $0x2c8] sm:$0xff]
    %v154 = vld [vmem:[#allocation5 + $0x2d0] sm:$0xff]
    %v155 = vld [vmem:[#allocation5 + $0x2d8] sm:$0xff]
    %v156 = vld [vmem:[#allocation5 + $0x2e0] sm:$0xff]
    %v157 = vld [vmem:[#allocation5 + $0x2e8] sm:$0xff]
    %v158 = vld [vmem:[#allocation5 + $0x2f0] sm:$0xff]
    %v159 = vld [vmem:[#allocation5 + $0x2f8] sm:$0xff]
    %v163 = vunpack.c.l.b16 %v61
    %v164 = vunpack.c.h.b16 %v61
    %v165 = vunpack.c.l.b16 %v62
    %v166 = vunpack.c.h.b16 %v62
    %v167 = vunpack.c.l.b16 %v63
    %v168 = vunpack.c.h.b16 %v63
    %v169 = vpack.c.b16 %v163, %v163
    %v170 = vpack.c.b16 %v164, %v164
    %v171 = vpack.c.b16 %v165, %v165
    %v172 = vpack.c.b16 %v166, %v166
    %v173 = vpack.c.b16 %v167, %v167
    %v174 = vpack.c.b16 %v168, %v168
    %v277 = vunpack.c.l.b16 %v64
    %v278 = vunpack.c.h.b16 %v64
    %v279 = vunpack.c.l.b16 %v65
    %v280 = vunpack.c.h.b16 %v65
    %v281 = vunpack.c.l.b16 %v66
    %v282 = vunpack.c.h.b16 %v66
    %v283 = vunpack.c.l.b16 %v67
    %v284 = vunpack.c.h.b16 %v67
    %v285 = vunpack.c.l.b16 %v68
    %v286 = vunpack.c.h.b16 %v68
    %v287 = vunpack.c.l.b16 %v69
    %v288 = vunpack.c.h.b16 %v69
    %v289 = vunpack.c.l.b16 %v70
    %v290 = vunpack.c.h.b16 %v70
    %v291 = vunpack.c.l.b16 %v71
    %v292 = vunpack.c.h.b16 %v71
    %v293 = vunpack.c.l.b16 %v72
    %v294 = vunpack.c.h.b16 %v72
    %v295 = vunpack.c.l.b16 %v73
    %v296 = vunpack.c.h.b16 %v73
    %v297 = vunpack.c.l.b16 %v74
    %v298 = vunpack.c.h.b16 %v74
    %v299 = vunpack.c.l.b16 %v75
    %v300 = vunpack.c.h.b16 %v75
    %v301 = vunpack.c.l.b16 %v76
    %v302 = vunpack.c.h.b16 %v76
    %v303 = vunpack.c.l.b16 %v77
    %v304 = vunpack.c.h.b16 %v77
    %v305 = vunpack.c.l.b16 %v78
    %v306 = vunpack.c.h.b16 %v78
    %v307 = vunpack.c.l.b16 %v79
    %v308 = vunpack.c.h.b16 %v79
    %v309 = vunpack.c.l.b16 %v80
    %v310 = vunpack.c.h.b16 %v80
    %v311 = vunpack.c.l.b16 %v81
    %v312 = vunpack.c.h.b16 %v81
    %v313 = vunpack.c.l.b16 %v82
    %v314 = vunpack.c.h.b16 %v82
    %v315 = vunpack.c.l.b16 %v83
    %v316 = vunpack.c.h.b16 %v83
    %v317 = vunpack.c.l.b16 %v84
    %v318 = vunpack.c.h.b16 %v84
    %v319 = vunpack.c.l.b16 %v85
    %v320 = vunpack.c.h.b16 %v85
    %v321 = vunpack.c.l.b16 %v86
    %v322 = vunpack.c.h.b16 %v86
    %v323 = vunpack.c.l.b16 %v87
    %v324 = vunpack.c.h.b16 %v87
    %v325 = vunpack.c.l.b16 %v88
    %v326 = vunpack.c.h.b16 %v88
    %v327 = vunpack.c.l.b16 %v89
    %v328 = vunpack.c.h.b16 %v89
    %v329 = vunpack.c.l.b16 %v90
    %v330 = vunpack.c.h.b16 %v90
    %v331 = vunpack.c.l.b16 %v91
    %v332 = vunpack.c.h.b16 %v91
    %v333 = vunpack.c.l.b16 %v92
    %v334 = vunpack.c.h.b16 %v92
    %v335 = vunpack.c.l.b16 %v93
    %v336 = vunpack.c.h.b16 %v93
    %v337 = vunpack.c.l.b16 %v94
    %v338 = vunpack.c.h.b16 %v94
    %v339 = vunpack.c.l.b16 %v95
    %v340 = vunpack.c.h.b16 %v95
    %v341 = vunpack.c.l.b16 %v96
    %v342 = vunpack.c.h.b16 %v96
    %v343 = vunpack.c.l.b16 %v97
    %v344 = vunpack.c.h.b16 %v97
    %v345 = vunpack.c.l.b16 %v98
    %v346 = vunpack.c.h.b16 %v98
    %v347 = vunpack.c.l.b16 %v99
    %v348 = vunpack.c.h.b16 %v99
    %v349 = vunpack.c.l.b16 %v100
    %v350 = vunpack.c.h.b16 %v100
    %v351 = vunpack.c.l.b16 %v101
    %v352 = vunpack.c.h.b16 %v101
    %v353 = vunpack.c.l.b16 %v102
    %v354 = vunpack.c.h.b16 %v102
    %v355 = vunpack.c.l.b16 %v103
    %v356 = vunpack.c.h.b16 %v103
    %v357 = vunpack.c.l.b16 %v104
    %v358 = vunpack.c.h.b16 %v104
    %v359 = vunpack.c.l.b16 %v105
    %v360 = vunpack.c.h.b16 %v105
    %v361 = vunpack.c.l.b16 %v106
    %v362 = vunpack.c.h.b16 %v106
    %v363 = vunpack.c.l.b16 %v107
    %v364 = vunpack.c.h.b16 %v107
    %v365 = vunpack.c.l.b16 %v108
    %v366 = vunpack.c.h.b16 %v108
    %v367 = vunpack.c.l.b16 %v109
    %v368 = vunpack.c.h.b16 %v109
    %v369 = vunpack.c.l.b16 %v110
    %v370 = vunpack.c.h.b16 %v110
    %v371 = vunpack.c.l.b16 %v111
    %v372 = vunpack.c.h.b16 %v111
    %v373 = vunpack.c.l.b16 %v112
    %v374 = vunpack.c.h.b16 %v112
    %v375 = vunpack.c.l.b16 %v113
    %v376 = vunpack.c.h.b16 %v113
    %v377 = vunpack.c.l.b16 %v114
    %v378 = vunpack.c.h.b16 %v114
    %v379 = vunpack.c.l.b16 %v115
    %v380 = vunpack.c.h.b16 %v115
    %v381 = vunpack.c.l.b16 %v116
    %v382 = vunpack.c.h.b16 %v116
    %v383 = vunpack.c.l.b16 %v117
    %v384 = vunpack.c.h.b16 %v117
    %v385 = vunpack.c.l.b16 %v118
    %v386 = vunpack.c.h.b16 %v118
    %v387 = vunpack.c.l.b16 %v119
    %v388 = vunpack.c.h.b16 %v119
    %v389 = vunpack.c.l.b16 %v120
    %v390 = vunpack.c.h.b16 %v120
    %v391 = vunpack.c.l.b16 %v121
    %v392 = vunpack.c.h.b16 %v121
    %v393 = vunpack.c.l.b16 %v122
    %v394 = vunpack.c.h.b16 %v122
    %v395 = vunpack.c.l.b16 %v123
    %v396 = vunpack.c.h.b16 %v123
    %v397 = vunpack.c.l.b16 %v124
    %v398 = vunpack.c.h.b16 %v124
    %v399 = vunpack.c.l.b16 %v125
    %v400 = vunpack.c.h.b16 %v125
    %v401 = vunpack.c.l.b16 %v126
    %v402 = vunpack.c.h.b16 %v126
    %v403 = vunpack.c.l.b16 %v127
    %v404 = vunpack.c.h.b16 %v127
    %v405 = vunpack.c.l.b16 %v128
    %v406 = vunpack.c.h.b16 %v128
    %v407 = vunpack.c.l.b16 %v129
    %v408 = vunpack.c.h.b16 %v129
    %v409 = vunpack.c.l.b16 %v130
    %v410 = vunpack.c.h.b16 %v130
    %v411 = vunpack.c.l.b16 %v131
    %v412 = vunpack.c.h.b16 %v131
    %v413 = vunpack.c.l.b16 %v132
    %v414 = vunpack.c.h.b16 %v132
    %v415 = vunpack.c.l.b16 %v133
    %v416 = vunpack.c.h.b16 %v133
    %v417 = vunpack.c.l.b16 %v134
    %v418 = vunpack.c.h.b16 %v134
    %v419 = vunpack.c.l.b16 %v135
    %v420 = vunpack.c.h.b16 %v135
    %v421 = vunpack.c.l.b16 %v136
    %v422 = vunpack.c.h.b16 %v136
    %v423 = vunpack.c.l.b16 %v137
    %v424 = vunpack.c.h.b16 %v137
    %v425 = vunpack.c.l.b16 %v138
    %v426 = vunpack.c.h.b16 %v138
    %v427 = vunpack.c.l.b16 %v139
    %v428 = vunpack.c.h.b16 %v139
    %v429 = vunpack.c.l.b16 %v140
    %v430 = vunpack.c.h.b16 %v140
    %v431 = vunpack.c.l.b16 %v141
    %v432 = vunpack.c.h.b16 %v141
    %v433 = vunpack.c.l.b16 %v142
    %v434 = vunpack.c.h.b16 %v142
    %v435 = vunpack.c.l.b16 %v143
    %v436 = vunpack.c.h.b16 %v143
    %v437 = vunpack.c.l.b16 %v144
    %v438 = vunpack.c.h.b16 %v144
    %v439 = vunpack.c.l.b16 %v145
    %v440 = vunpack.c.h.b16 %v145
    %v441 = vunpack.c.l.b16 %v146
    %v442 = vunpack.c.h.b16 %v146
    %v443 = vunpack.c.l.b16 %v147
    %v444 = vunpack.c.h.b16 %v147
    %v445 = vunpack.c.l.b16 %v148
    %v446 = vunpack.c.h.b16 %v148
    %v447 = vunpack.c.l.b16 %v149
    %v448 = vunpack.c.h.b16 %v149
    %v449 = vunpack.c.l.b16 %v150
    %v450 = vunpack.c.h.b16 %v150
    %v451 = vunpack.c.l.b16 %v151
    %v452 = vunpack.c.h.b16 %v151
    %v453 = vunpack.c.l.b16 %v152
    %v454 = vunpack.c.h.b16 %v152
    %v455 = vunpack.c.l.b16 %v153
    %v456 = vunpack.c.h.b16 %v153
    %v457 = vunpack.c.l.b16 %v154
    %v458 = vunpack.c.h.b16 %v154
    %v459 = vunpack.c.l.b16 %v155
    %v460 = vunpack.c.h.b16 %v155
    %v461 = vunpack.c.l.b16 %v156
    %v462 = vunpack.c.h.b16 %v156
    %v463 = vunpack.c.l.b16 %v157
    %v464 = vunpack.c.h.b16 %v157
    %v465 = vunpack.c.l.b16 %v158
    %v466 = vunpack.c.h.b16 %v158
    %v467 = vunpack.c.l.b16 %v159
    %v468 = vunpack.c.h.b16 %v159
    %v469 = vpack.c.b16 %v279, %v277
    %v470 = vpack.c.b16 %v280, %v278
    %v471 = vpack.c.b16 %v283, %v281
    %v472 = vpack.c.b16 %v284, %v282
    %v473 = vpack.c.b16 %v287, %v285
    %v474 = vpack.c.b16 %v288, %v286
    %v475 = vpack.c.b16 %v291, %v289
    %v476 = vpack.c.b16 %v292, %v290
    %v477 = vpack.c.b16 %v295, %v293
    %v478 = vpack.c.b16 %v296, %v294
    %v479 = vpack.c.b16 %v299, %v297
    %v480 = vpack.c.b16 %v300, %v298
    %v481 = vpack.c.b16 %v303, %v301
    %v482 = vpack.c.b16 %v304, %v302
    %v483 = vpack.c.b16 %v307, %v305
    %v484 = vpack.c.b16 %v308, %v306
    %v485 = vpack.c.b16 %v311, %v309
    %v486 = vpack.c.b16 %v312, %v310
    %v487 = vpack.c.b16 %v315, %v313
    %v488 = vpack.c.b16 %v316, %v314
    %v489 = vpack.c.b16 %v319, %v317
    %v490 = vpack.c.b16 %v320, %v318
    %v491 = vpack.c.b16 %v323, %v321
    %v492 = vpack.c.b16 %v324, %v322
    %v493 = vpack.c.b16 %v327, %v325
    %v494 = vpack.c.b16 %v328, %v326
    %v495 = vpack.c.b16 %v331, %v329
    %v496 = vpack.c.b16 %v332, %v330
    %v497 = vpack.c.b16 %v335, %v333
    %v498 = vpack.c.b16 %v336, %v334
    %v499 = vpack.c.b16 %v339, %v337
    %v500 = vpack.c.b16 %v340, %v338
    %v501 = vpack.c.b16 %v343, %v341
    %v502 = vpack.c.b16 %v344, %v342
    %v503 = vpack.c.b16 %v347, %v345
    %v504 = vpack.c.b16 %v348, %v346
    %v505 = vpack.c.b16 %v351, %v349
    %v506 = vpack.c.b16 %v352, %v350
    %v507 = vpack.c.b16 %v355, %v353
    %v508 = vpack.c.b16 %v356, %v354
    %v509 = vpack.c.b16 %v359, %v357
    %v510 = vpack.c.b16 %v360, %v358
    %v511 = vpack.c.b16 %v363, %v361
    %v512 = vpack.c.b16 %v364, %v362
    %v513 = vpack.c.b16 %v367, %v365
    %v514 = vpack.c.b16 %v368, %v366
    %v515 = vpack.c.b16 %v371, %v369
    %v516 = vpack.c.b16 %v372, %v370
    %v517 = vpack.c.b16 %v375, %v373
    %v518 = vpack.c.b16 %v376, %v374
    %v519 = vpack.c.b16 %v379, %v377
    %v520 = vpack.c.b16 %v380, %v378
    %v521 = vpack.c.b16 %v383, %v381
    %v522 = vpack.c.b16 %v384, %v382
    %v523 = vpack.c.b16 %v387, %v385
    %v524 = vpack.c.b16 %v388, %v386
    %v525 = vpack.c.b16 %v391, %v389
    %v526 = vpack.c.b16 %v392, %v390
    %v527 = vpack.c.b16 %v395, %v393
    %v528 = vpack.c.b16 %v396, %v394
    %v529 = vpack.c.b16 %v399, %v397
    %v530 = vpack.c.b16 %v400, %v398
    %v531 = vpack.c.b16 %v403, %v401
    %v532 = vpack.c.b16 %v404, %v402
    %v533 = vpack.c.b16 %v407, %v405
    %v534 = vpack.c.b16 %v408, %v406
    %v535 = vpack.c.b16 %v411, %v409
    %v536 = vpack.c.b16 %v412, %v410
    %v537 = vpack.c.b16 %v415, %v413
    %v538 = vpack.c.b16 %v416, %v414
    %v539 = vpack.c.b16 %v419, %v417
    %v540 = vpack.c.b16 %v420, %v418
    %v541 = vpack.c.b16 %v423, %v421
    %v542 = vpack.c.b16 %v424, %v422
    %v543 = vpack.c.b16 %v427, %v425
    %v544 = vpack.c.b16 %v428, %v426
    %v545 = vpack.c.b16 %v431, %v429
    %v546 = vpack.c.b16 %v432, %v430
    %v547 = vpack.c.b16 %v435, %v433
    %v548 = vpack.c.b16 %v436, %v434
    %v549 = vpack.c.b16 %v439, %v437
    %v550 = vpack.c.b16 %v440, %v438
    %v551 = vpack.c.b16 %v443, %v441
    %v552 = vpack.c.b16 %v444, %v442
    %v553 = vpack.c.b16 %v447, %v445
    %v554 = vpack.c.b16 %v448, %v446
    %v555 = vpack.c.b16 %v451, %v449
    %v556 = vpack.c.b16 %v452, %v450
    %v557 = vpack.c.b16 %v455, %v453
    %v558 = vpack.c.b16 %v456, %v454
    %v559 = vpack.c.b16 %v459, %v457
    %v560 = vpack.c.b16 %v460, %v458
    %v561 = vpack.c.b16 %v463, %v461
    %v562 = vpack.c.b16 %v464, %v462
    %v563 = vpack.c.b16 %v467, %v465
    %v564 = vpack.c.b16 %v468, %v466
    %661 = vmatprep.subr.bf16.mxu0 %v484
    %662 = vmatpush1.bf16.msra.mxu0 %v483
    %663 = vmatprep.subr.bf16.mxu0 %v482
    %664 = vmatpush1.bf16.msra.mxu0 %v481
    %665 = vmatprep.subr.bf16.mxu0 %v480
    %666 = vmatpush1.bf16.msra.mxu0 %v479
    %667 = vmatprep.subr.bf16.mxu0 %v478
    %668 = vmatpush1.bf16.msra.mxu0 %v477
    %669 = vmatprep.subr.bf16.mxu0 %v476
    %670 = vmatpush1.bf16.msra.mxu0 %v475
    %671 = vmatprep.subr.bf16.mxu0 %v474
    %672 = vmatpush1.bf16.msra.mxu0 %v473
    %673 = vmatprep.subr.bf16.mxu0 %v472
    %674 = vmatpush1.bf16.msra.mxu0 %v471
    %675 = vmatprep.subr.bf16.mxu0 %v470
    %676 = vmatpush1.bf16.msra.mxu0 %v469
    %677 = vmatprep.subr.bf16.mxu0 %v500
    %678 = vmatpush2.bf16.msra.mxu0 %v499
    %679 = vmatprep.subr.bf16.mxu0 %v498
    %680 = vmatpush2.bf16.msra.mxu0 %v497
    %681 = vmatprep.subr.bf16.mxu0 %v496
    %682 = vmatpush2.bf16.msra.mxu0 %v495
    %683 = vmatprep.subr.bf16.mxu0 %v494
    %684 = vmatpush2.bf16.msra.mxu0 %v493
    %685 = vmatprep.subr.bf16.mxu0 %v492
    %686 = vmatpush2.bf16.msra.mxu0 %v491
    %687 = vmatprep.subr.bf16.mxu0 %v490
    %688 = vmatpush2.bf16.msra.mxu0 %v489
    %689 = vmatprep.subr.bf16.mxu0 %v488
    %690 = vmatpush2.bf16.msra.mxu0 %v487
    %691 = vmatprep.subr.bf16.mxu0 %v486
    %692 = vmatpush2.bf16.msra.mxu0 %v485
    %693 = vmatprep.mubr.bf16.mxu0 %v170
    %694 = vmatmul.mubr.bf16.gmra.mxu0 %v169
    %v695 = vpop.f32.mrf.mxu0
    %v696 = vadd.f32 0.0, %v695
    %v697 = vpop.f32.mrf.mxu0
    %v698 = vadd.f32 0.0, %v697
    %v699 = vpop.f32.mrf.mxu0
    %v700 = vpop.f32.mrf.mxu0
    %701 = vdwg.mxu0
    %702 = vmatprep.subr.bf16.mxu0 %v516
    %703 = vmatpush1.bf16.msra.mxu0 %v515
    %704 = vmatprep.subr.bf16.mxu0 %v514
    %705 = vmatpush1.bf16.msra.mxu0 %v513
    %706 = vmatprep.subr.bf16.mxu0 %v512
    %707 = vmatpush1.bf16.msra.mxu0 %v511
    %708 = vmatprep.subr.bf16.mxu0 %v510
    %709 = vmatpush1.bf16.msra.mxu0 %v509
    %710 = vmatprep.subr.bf16.mxu0 %v508
    %711 = vmatpush1.bf16.msra.mxu0 %v507
    %712 = vmatprep.subr.bf16.mxu0 %v506
    %713 = vmatpush1.bf16.msra.mxu0 %v505
    %714 = vmatprep.subr.bf16.mxu0 %v504
    %715 = vmatpush1.bf16.msra.mxu0 %v503
    %716 = vmatprep.subr.bf16.mxu0 %v502
    %717 = vmatpush1.bf16.msra.mxu0 %v501
    %718 = vmatprep.subr.bf16.mxu0 %v532
    %719 = vmatpush2.bf16.msra.mxu0 %v531
    %720 = vmatprep.subr.bf16.mxu0 %v530
    %721 = vmatpush2.bf16.msra.mxu0 %v529
    %722 = vmatprep.subr.bf16.mxu0 %v528
    %723 = vmatpush2.bf16.msra.mxu0 %v527
    %724 = vmatprep.subr.bf16.mxu0 %v526
    %725 = vmatpush2.bf16.msra.mxu0 %v525
    %726 = vmatprep.subr.bf16.mxu0 %v524
    %727 = vmatpush2.bf16.msra.mxu0 %v523
    %728 = vmatprep.subr.bf16.mxu0 %v522
    %729 = vmatpush2.bf16.msra.mxu0 %v521
    %730 = vmatprep.subr.bf16.mxu0 %v520
    %731 = vmatpush2.bf16.msra.mxu0 %v519
    %732 = vmatprep.subr.bf16.mxu0 %v518
    %733 = vmatpush2.bf16.msra.mxu0 %v517
    %734 = vmatprep.mubr.bf16.mxu0 %v172
    %735 = vmatmul.mubr.bf16.gmra.mxu0 %v171
    %v736 = vpop.f32.mrf.mxu0
    %v737 = vadd.f32 %v696, %v736
    %v738 = vpop.f32.mrf.mxu0
    %v739 = vadd.f32 %v698, %v738
    %v740 = vpop.f32.mrf.mxu0
    %v741 = vpop.f32.mrf.mxu0
    %742 = vdwg.mxu0
    %743 = vmatprep.subr.bf16.mxu0 %v548
    %744 = vmatpush1.bf16.msra.mxu0 %v547
    %745 = vmatprep.subr.bf16.mxu0 %v546
    %746 = vmatpush1.bf16.msra.mxu0 %v545
    %747 = vmatprep.subr.bf16.mxu0 %v544
    %748 = vmatpush1.bf16.msra.mxu0 %v543
    %749 = vmatprep.subr.bf16.mxu0 %v542
    %750 = vmatpush1.bf16.msra.mxu0 %v541
    %751 = vmatprep.subr.bf16.mxu0 %v540
    %752 = vmatpush1.bf16.msra.mxu0 %v539
    %753 = vmatprep.subr.bf16.mxu0 %v538
    %754 = vmatpush1.bf16.msra.mxu0 %v537
    %755 = vmatprep.subr.bf16.mxu0 %v536
    %756 = vmatpush1.bf16.msra.mxu0 %v535
    %757 = vmatprep.subr.bf16.mxu0 %v534
    %758 = vmatpush1.bf16.msra.mxu0 %v533
    %759 = vmatprep.subr.bf16.mxu0 %v564
    %760 = vmatpush2.bf16.msra.mxu0 %v563
    %761 = vmatprep.subr.bf16.mxu0 %v562
    %762 = vmatpush2.bf16.msra.mxu0 %v561
    %763 = vmatprep.subr.bf16.mxu0 %v560
    %764 = vmatpush2.bf16.msra.mxu0 %v559
    %765 = vmatprep.subr.bf16.mxu0 %v558
    %766 = vmatpush2.bf16.msra.mxu0 %v557
    %767 = vmatprep.subr.bf16.mxu0 %v556
    %768 = vmatpush2.bf16.msra.mxu0 %v555
    %769 = vmatprep.subr.bf16.mxu0 %v554
    %770 = vmatpush2.bf16.msra.mxu0 %v553
    %771 = vmatprep.subr.bf16.mxu0 %v552
    %772 = vmatpush2.bf16.msra.mxu0 %v551
    %773 = vmatprep.subr.bf16.mxu0 %v550
    %774 = vmatpush2.bf16.msra.mxu0 %v549
    %775 = vmatprep.mubr.bf16.mxu0 %v174
    %776 = vmatmul.mubr.bf16.gmra.mxu0 %v173
    %v777 = vpop.f32.mrf.mxu0
    %v778 = vadd.f32 %v737, %v777
    %v779 = vpop.f32.mrf.mxu0
    %v780 = vadd.f32 %v739, %v779
    %v781 = vpop.f32.mrf.mxu0
    %v782 = vpop.f32.mrf.mxu0
    %783 = vdwg.mxu0
    %v786 = vcombine.low %v778, %v780
    %v787 = vcombine.high %v778, %v780
    %v790 = vld [vmem:[%s2] sm:$0x1]
    %v791 = vrot.slane %v786, 5
    %v792 = vrot.slane %v791, 4
    %v793 = vrot.slane %v787, 5
    %v794 = vrot.slane %v793, 4
    %v795 = vrot.slane %v792, 4
    %v796 = vrot.slane %v794, 4
    %v799 = vadd.f32 %v786, %v795
    %v800 = vadd.f32 %v787, %v796
    %v802 = vlaneseq
    %v803 = vshrl.u32 %v802, 7
    %v804 = vsub.s32 0, %v803
    %v805 = vrot.slane %v790, %v804
    %v807 = vadd.f32 %v799, %v805
    %v808 = vadd.f32 %v800, %v805
    %v809 = vmax.f32 %v807, 0.0
    %v810 = vmax.f32 %v808, 0.0
    %vm811 = vcmask 1042432
    %v812 = vsel %vm811, %v809, -inf
    %v813 = vrot.slane %v812, 4
    %v814 = vmax.f32 %v812, %v813
    %v815 = vrot.slane %v814, 2
    %v816 = vmax.f32 %v814, %v815
    %v817 = vrot.slane %v816, 1
    %v818 = vmax.f32 %v816, %v817
    %v819 = vsel %vm811, %v810, -inf
    %v820 = vrot.slane %v819, 4
    %v821 = vmax.f32 %v819, %v820
    %v822 = vrot.slane %v821, 2
    %v823 = vmax.f32 %v821, %v822
    %v824 = vrot.slane %v823, 1
    %v825 = vmax.f32 %v823, %v824
    %v826 = vpack.c.bf16 %v818, %v818
    %v827 = vpack.c.bf16 %v825, %v825
    %v828 = vld [vmem:[#allocation7] sm:$0xf]
    %v829 = vld [vmem:[#allocation7 + $0x4] sm:$0xf]
    %v830 = vld [vmem:[#allocation7 + $0x8] sm:$0xf]
    %v831 = vld [vmem:[#allocation7 + $0xc] sm:$0xf]
    %v832 = vld [vmem:[#allocation7 + $0x10] sm:$0xf]
    %v833 = vld [vmem:[#allocation7 + $0x14] sm:$0xf]
    %v834 = vld [vmem:[#allocation7 + $0x18] sm:$0xf]
    %v835 = vld [vmem:[#allocation7 + $0x1c] sm:$0xf]
    %v836 = vld [vmem:[#allocation7 + $0x20] sm:$0xf]
    %v837 = vld [vmem:[#allocation7 + $0x24] sm:$0xf]
    %v838 = vld [vmem:[#allocation7 + $0x28] sm:$0xf]
    %v839 = vld [vmem:[#allocation7 + $0x2c] sm:$0xf]
    %v840 = vld [vmem:[#allocation7 + $0x30] sm:$0xf]
    %v841 = vld [vmem:[#allocation7 + $0x34] sm:$0xf]
    %v842 = vld [vmem:[#allocation7 + $0x38] sm:$0xf]
    %v843 = vld [vmem:[#allocation7 + $0x3c] sm:$0xf]
    %v844 = vld [vmem:[%s4] sm:$0x1]
    %v846 = vlaneseq
    %v847 = vshrl.u32 %v846, 7
    %v848 = vsub.s32 0, %v847
    %v849 = vrot.slane %v844, %v848
    %v853 = vunpack.c.l.b16 %v826
    %v854 = vunpack.c.l.b16 %v827
    %vm855 = vcmask 1041409
    %v856 = vsel %vm855, %v854, %v853
    %v857 = vpack.c.b16 %v856, %v856
    %v875 = vunpack.c.l.b16 %v828
    %v876 = vunpack.c.l.b16 %v829
    %v877 = vunpack.c.l.b16 %v830
    %v878 = vunpack.c.l.b16 %v831
    %v879 = vunpack.c.l.b16 %v832
    %v880 = vunpack.c.l.b16 %v833
    %v881 = vunpack.c.l.b16 %v834
    %v882 = vunpack.c.l.b16 %v835
    %v883 = vunpack.c.l.b16 %v836
    %v884 = vunpack.c.l.b16 %v837
    %v885 = vunpack.c.l.b16 %v838
    %v886 = vunpack.c.l.b16 %v839
    %v887 = vunpack.c.l.b16 %v840
    %v888 = vunpack.c.l.b16 %v841
    %v889 = vunpack.c.l.b16 %v842
    %v890 = vunpack.c.l.b16 %v843
    %v891 = vpack.c.b16 %v876, %v875
    %v892 = vpack.c.b16 %v878, %v877
    %v893 = vpack.c.b16 %v880, %v879
    %v894 = vpack.c.b16 %v882, %v881
    %v895 = vpack.c.b16 %v884, %v883
    %v896 = vpack.c.b16 %v886, %v885
    %v897 = vpack.c.b16 %v888, %v887
    %v898 = vpack.c.b16 %v890, %v889
    %907 = vmatprep.subr.bf16.mxu0 0
    %908 = vmatpush1.bf16.msra.mxu0 %v898
    %909 = vmatprep.subr.bf16.mxu0 0
    %910 = vmatpush1.bf16.msra.mxu0 %v897
    %911 = vmatprep.subr.bf16.mxu0 0
    %912 = vmatpush1.bf16.msra.mxu0 %v896
    %913 = vmatprep.subr.bf16.mxu0 0
    %914 = vmatpush1.bf16.msra.mxu0 %v895
    %915 = vmatprep.subr.bf16.mxu0 0
    %916 = vmatpush1.bf16.msra.mxu0 %v894
    %917 = vmatprep.subr.bf16.mxu0 0
    %918 = vmatpush1.bf16.msra.mxu0 %v893
    %919 = vmatprep.subr.bf16.mxu0 0
    %920 = vmatpush1.bf16.msra.mxu0 %v892
    %921 = vmatprep.subr.bf16.mxu0 0
    %922 = vmatpush1.bf16.msra.mxu0 %v891
    %923 = vmatprep.subr.bf16.mxu0 0
    %924 = vmatpush2.bf16.msra.mxu0 0
    %925 = vmatprep.subr.bf16.mxu0 0
    %926 = vmatpush2.bf16.msra.mxu0 0
    %927 = vmatprep.subr.bf16.mxu0 0
    %928 = vmatpush2.bf16.msra.mxu0 0
    %929 = vmatprep.subr.bf16.mxu0 0
    %930 = vmatpush2.bf16.msra.mxu0 0
    %931 = vmatprep.subr.bf16.mxu0 0
    %932 = vmatpush2.bf16.msra.mxu0 0
    %933 = vmatprep.subr.bf16.mxu0 0
    %934 = vmatpush2.bf16.msra.mxu0 0
    %935 = vmatprep.subr.bf16.mxu0 0
    %936 = vmatpush2.bf16.msra.mxu0 0
    %937 = vmatprep.subr.bf16.mxu0 0
    %938 = vmatpush2.bf16.msra.mxu0 0
    %939 = vmatprep.mubr.bf16.mxu0 0
    %940 = vmatmul.mubr.bf16.gmra.mxu0 %v857
    %v941 = vpop.f32.mrf.mxu0
    %v942 = vadd.f32 %v849, %v941
    %v943 = vpop.f32.mrf.mxu0
    %v944 = vpop.f32.mrf.mxu0
    %v945 = vpop.f32.mrf.mxu0
    %946 = vdwg.mxu0
    %947 = vst [vmem:[#allocation8] sm:$0x3] %v942
    // Predicated region
    $region34: #{tpu_custom_call.1} parent=1 // pred_check
      _
    $region35: #{tpu_custom_call.1} parent=1 // pred_check_branch
      %949 = sbr.rel (0) target = $region37
    $region36: #{tpu_custom_call.1} parent=1 // pred_region
      %s951 = ssub.s32 32, 32
      %952 = vsyncadd [#allocation4], %s951
      %s954 = sshll.u32 [#allocation8], 4
      %s955 = int_to_ptr.vmem [resolvable:$true] %s954
      %957 = dma.vmem_to_hbm [thread:$0]  %s955, 32, %s5, [#allocation4]
    $region37: #{tpu_custom_call.1} parent=1 // pred_fallthru
      _
    // Predicated region
    $region38: #{tpu_custom_call.1} parent=1 // pred_check
      _
    $region39: #{tpu_custom_call.1} parent=1 // pred_check_branch
      %959 = sbr.rel (0) target = $region41
    $region40: #{tpu_custom_call.1} parent=1 // pred_region
      %960 = dma.done [#allocation4], 32
    $region41: #{tpu_custom_call.1} parent=1 // pred_fallthru
      _
    %961 = vsyncpa [#allocation3], 1
    %962 = vsyncpa [#allocation6], 1
    %963 = vsyncpa [#allocation4], 1

</llo_original>
